<compile_context>
chip_gen: v5e
topology: v5e:2x2
jax: 0.10.0
libtpu: 0.0.40
codegen_flags: <defaults>
</compile_context>

<pallas_src>
import functools

import jax
import jax.numpy as jnp
from jax.experimental import pallas as pl
from jax.experimental.pallas import tpu as pltpu


def _round_up(x, m):
    return ((x + m - 1) // m) * m


def fcnn_kernel(x_ref,
                w1_ref, b1_ref,
                w2_ref, b2_ref,
                w3_ref, b3_ref,
                w4_ref, b4_ref,
                o_ref):
    """Fused MLP forward for one batch tile.

    x_ref : (TB, in_dim)   f32
    w1    : (in_dim, H)    f32   (tiny K -> VPU broadcast-FMA path)
    w2,w3 : (H, H)         f32   (MXU)
    w4    : (H, OUT_PAD)   f32   (columns zero-padded to a lane-dense width)
    b*    : (1, ...)       f32
    o_ref : (TB, out_dim)  f32   (compact output block)
    """
    x = x_ref[...]                               # (TB, in_dim)
    w1 = w1_ref[...]                             # (in_dim, H)
    in_dim = w1.shape[0]

    # ---- Layer 1: K = in_dim (3) is far too small for the MXU -> VPU MACs ----
    acc = jnp.zeros((x.shape[0], w1.shape[1]), jnp.float32)
    for k in range(in_dim):                      # static unroll (in_dim tiny)
        acc = acc + x[:, k:k + 1] * w1[k:k + 1, :]
    h = jnp.maximum(acc + b1_ref[...], 0.0)

    # ---- Layers 2..3: f32 MXU matmuls (compute is never the binding slot) ----
    h = jnp.maximum(
        jnp.dot(h, w2_ref[...], preferred_element_type=jnp.float32) + b2_ref[...],
        0.0)
    h = jnp.maximum(
        jnp.dot(h, w3_ref[...], preferred_element_type=jnp.float32) + b3_ref[...],
        0.0)

    # ---- Final layer: wide (lane-padded) matmul, keep only real columns ----
    out = jnp.dot(h, w4_ref[...], preferred_element_type=jnp.float32)
    o_ref[...] = (out[:, :o_ref.shape[1]] + b4_ref[...]).astype(o_ref.dtype)


def prepare_fcnn_params(params, lane_width=128):
    """One-time parameter prep, hoisted out of the per-call forward path.

    Only zero-pads the final layer's weight columns up to a lane-dense width so
    the last matmul stays MXU-wide; the kernel slices back to out_dim before
    storing (the extra columns are free compute, never stored to HBM).
    """
    (w1, b1), (w2, b2), (w3, b3), (w4, b4) = params
    out_dim = w4.shape[1]
    padded = _round_up(out_dim, lane_width)
    w4p = jnp.pad(w4, ((0, 0), (0, padded - out_dim)))
    return ((w1, b1), (w2, b2), (w3, b3), (w4p, b4))


@functools.partial(jax.jit, static_argnames=("block_b",))
def fcnn_forward(x, prepared_params, block_b=2048):
    """x: (B, input_dim) f32. prepared_params: output of prepare_fcnn_params."""
    (w1, b1), (w2, b2), (w3, b3), (w4p, b4) = prepared_params
    B, in_dim = x.shape
    out_dim = b4.shape[1]

    # Batch tile: as large as possible (amortize per-grid-step overhead, bigger
    # DMA bursts), but capped so large batches still give >= ~4 grid steps for
    # pipelining and 2-TensorCore sharding on v7x.  No jnp.pad of x: ragged
    # trailing blocks are fine because rows are independent and out-of-bounds
    # output rows are dropped.
    TB = min(block_b,
             _round_up(B, 8),
             max(256, _round_up(pl.cdiv(B, 4), 8)))
    grid = (pl.cdiv(B, TB),)

    x_spec = pl.BlockSpec((TB, in_dim), lambda i: (i, 0))
    out_spec = pl.BlockSpec((TB, out_dim), lambda i: (i, 0))
    # Weights/biases: VMEM-resident, constant index_map (fetched once).
    resident = lambda arr: pl.BlockSpec(arr.shape, lambda i: (0,) * arr.ndim)

    return pl.pallas_call(
        fcnn_kernel,
        out_shape=jax.ShapeDtypeStruct((B, out_dim), jnp.float32),
        grid_spec=pltpu.PrefetchScalarGridSpec(
            num_scalar_prefetch=0,
            grid=grid,
            in_specs=[
                x_spec,
                resident(w1), resident(b1),
                resident(w2), resident(b2),
                resident(w3), resident(b3),
                resident(w4p), resident(b4),
            ],
            out_specs=out_spec,
        ),
        compiler_params=pltpu.CompilerParams(
            dimension_semantics=("parallel",),        # 2-TC sharding on v7x
            vmem_limit_bytes=32 * 1024 * 1024,        # headroom on v5e's 16 MiB default
        ),
    )(x, w1, b1, w2, b2, w3, b3, w4p, b4)


def init_fcnn_params(key, input_dim=3, output_dim=2, hidden_layers=(128, 128, 128)):
    """Deterministic init mimicking PyTorch nn.Linear default (uniform +-1/sqrt(fan_in))."""
    dims = [input_dim] + list(hidden_layers) + [output_dim]
    params = []
    for i in range(len(dims) - 1):
        fan_in, fan_out = dims[i], dims[i + 1]
        key, kw, kb = jax.random.split(key, 3)
        bound = 1.0 / jnp.sqrt(jnp.float32(fan_in))
        W = jax.random.uniform(kw, (fan_in, fan_out), jnp.float32, -bound, bound)
        b = jax.random.uniform(kb, (1, fan_out), jnp.float32, -bound, bound)
        params.append((W, b))
    return params


def fcnn_reference(x, params):
    """Plain JAX (f32) reference of the same forward pass."""
    h = x
    for i, (W, b) in enumerate(params):
        h = h @ W + b
        if i < len(params) - 1:
            h = jnp.maximum(h, 0.0)
    return h


if __name__ == "__main__":
    key = jax.random.PRNGKey(0)
    k_params, k_x1, k_x2 = jax.random.split(key, 3)

    input_dim, output_dim = 3, 2
    params = init_fcnn_params(k_params, input_dim=input_dim, output_dim=output_dim,
                              hidden_layers=(128, 128, 128))
    prepared = prepare_fcnn_params(params)   # one-time weight prep (hoisted)

    # Small smoke test (single tile).
    x_small = jax.random.normal(k_x1, (8, input_dim), dtype=jnp.float32)
    out_small = jax.block_until_ready(fcnn_forward(x_small, prepared))
    ref_small = fcnn_reference(x_small, params)
    assert out_small.shape == (8, output_dim), out_small.shape
    assert jnp.allclose(out_small, ref_small, atol=5e-2, rtol=5e-2), (out_small, ref_small)

    # Multi-tile grid + ragged trailing block (1000 rows -> TB=256, 4 steps).
    x_big = jax.random.normal(k_x2, (1000, input_dim), dtype=jnp.float32)
    out_big = jax.block_until_ready(fcnn_forward(x_big, prepared))
    ref_big = fcnn_reference(x_big, params)
    assert out_big.shape == (1000, output_dim), out_big.shape
    assert jnp.allclose(out_big, ref_big, atol=5e-2, rtol=5e-2)

    print("KERNEL_OK")
</pallas_src>

<mosaic_0001>
module attributes {stable_mosaic.version = 11 : i64} {
  func.func @fcnn_kernel(%arg0: i32, %arg1: memref<8x3xf32, #tpu.memory_space<vmem>>, %arg2: memref<3x128xf32, #tpu.memory_space<vmem>>, %arg3: memref<1x128xf32, #tpu.memory_space<vmem>>, %arg4: memref<128x128xf32, #tpu.memory_space<vmem>>, %arg5: memref<1x128xf32, #tpu.memory_space<vmem>>, %arg6: memref<128x128xf32, #tpu.memory_space<vmem>>, %arg7: memref<1x128xf32, #tpu.memory_space<vmem>>, %arg8: memref<128x128xf32, #tpu.memory_space<vmem>>, %arg9: memref<1x2xf32, #tpu.memory_space<vmem>>, %arg10: memref<8x2xf32, #tpu.memory_space<vmem>>) attributes {dimension_semantics = [#tpu.dimension_semantics<parallel>], iteration_bounds = array<i64: 1>, scalar_prefetch = 0 : i64, scratch_operands = 0 : i64, tpu.core_type = #tpu.core_type<tc>, window_params = [{transform_indices = @transform_0, window_bounds = array<i64: 8, 3>}, {pipeline_mode = #tpu.pipeline_mode<synchronous>, transform_indices = @transform_1, window_bounds = array<i64: 3, 128>}, {pipeline_mode = #tpu.pipeline_mode<synchronous>, transform_indices = @transform_2, window_bounds = array<i64: 1, 128>}, {pipeline_mode = #tpu.pipeline_mode<synchronous>, transform_indices = @transform_3, window_bounds = array<i64: 128, 128>}, {pipeline_mode = #tpu.pipeline_mode<synchronous>, transform_indices = @transform_4, window_bounds = array<i64: 1, 128>}, {pipeline_mode = #tpu.pipeline_mode<synchronous>, transform_indices = @transform_5, window_bounds = array<i64: 128, 128>}, {pipeline_mode = #tpu.pipeline_mode<synchronous>, transform_indices = @transform_6, window_bounds = array<i64: 1, 128>}, {pipeline_mode = #tpu.pipeline_mode<synchronous>, transform_indices = @transform_7, window_bounds = array<i64: 128, 128>}, {pipeline_mode = #tpu.pipeline_mode<synchronous>, transform_indices = @transform_8, window_bounds = array<i64: 1, 2>}, {transform_indices = @transform_9, window_bounds = array<i64: 8, 2>}]} {
    %c0 = arith.constant 0 : index
    %c0_0 = arith.constant 0 : index
    %0 = vector.load %arg1[%c0, %c0_0] : memref<8x3xf32, #tpu.memory_space<vmem>>, vector<8x3xf32>
    %c0_1 = arith.constant 0 : index
    %c0_2 = arith.constant 0 : index
    %1 = vector.load %arg2[%c0_1, %c0_2] : memref<3x128xf32, #tpu.memory_space<vmem>>, vector<3x128xf32>
    %cst = arith.constant 0.000000e+00 : f32
    %2 = vector.broadcast %cst : f32 to vector<8x128xf32>
    %3 = vector.extract_strided_slice %0 {offsets = [0, 0], sizes = [8, 1], strides = [1, 1]} : vector<8x3xf32> to vector<8x1xf32>
    %4 = vector.extract_strided_slice %1 {offsets = [0, 0], sizes = [1, 128], strides = [1, 1]} : vector<3x128xf32> to vector<1x128xf32>
    %5 = vector.broadcast %3 : vector<8x1xf32> to vector<8x128xf32>
    %6 = vector.broadcast %4 : vector<1x128xf32> to vector<8x128xf32>
    %7 = arith.mulf %5, %6 : vector<8x128xf32>
    %8 = arith.addf %2, %7 : vector<8x128xf32>
    %9 = vector.extract_strided_slice %0 {offsets = [0, 1], sizes = [8, 1], strides = [1, 1]} : vector<8x3xf32> to vector<8x1xf32>
    %10 = vector.extract_strided_slice %1 {offsets = [1, 0], sizes = [1, 128], strides = [1, 1]} : vector<3x128xf32> to vector<1x128xf32>
    %11 = vector.broadcast %9 : vector<8x1xf32> to vector<8x128xf32>
    %12 = vector.broadcast %10 : vector<1x128xf32> to vector<8x128xf32>
    %13 = arith.mulf %11, %12 : vector<8x128xf32>
    %14 = arith.addf %8, %13 : vector<8x128xf32>
    %15 = vector.extract_strided_slice %0 {offsets = [0, 2], sizes = [8, 1], strides = [1, 1]} : vector<8x3xf32> to vector<8x1xf32>
    %16 = vector.extract_strided_slice %1 {offsets = [2, 0], sizes = [1, 128], strides = [1, 1]} : vector<3x128xf32> to vector<1x128xf32>
    %17 = vector.broadcast %15 : vector<8x1xf32> to vector<8x128xf32>
    %18 = vector.broadcast %16 : vector<1x128xf32> to vector<8x128xf32>
    %19 = arith.mulf %17, %18 : vector<8x128xf32>
    %20 = arith.addf %14, %19 : vector<8x128xf32>
    %c0_3 = arith.constant 0 : index
    %c0_4 = arith.constant 0 : index
    %21 = vector.load %arg3[%c0_3, %c0_4] : memref<1x128xf32, #tpu.memory_space<vmem>>, vector<1x128xf32>
    %22 = vector.broadcast %21 : vector<1x128xf32> to vector<8x128xf32>
    %23 = arith.addf %20, %22 : vector<8x128xf32>
    %cst_5 = arith.constant 0.000000e+00 : f32
    %24 = vector.broadcast %cst_5 : f32 to vector<8x128xf32>
    %25 = arith.maximumf %23, %24 : vector<8x128xf32>
    %c0_6 = arith.constant 0 : index
    %c0_7 = arith.constant 0 : index
    %26 = vector.load %arg4[%c0_6, %c0_7] : memref<128x128xf32, #tpu.memory_space<vmem>>, vector<128x128xf32>
    %cst_8 = arith.constant dense<0.000000e+00> : vector<8x128xf32>
    %27 = tpu.matmul %25, %26, %cst_8 {dimension_numbers = #tpu.dot_dimension_numbers<[1], [0], [0], [1], [0, 0, 1, 1], [], []>} : vector<8x128xf32>, vector<128x128xf32>, vector<8x128xf32> -> vector<8x128xf32>
    %c0_9 = arith.constant 0 : index
    %c0_10 = arith.constant 0 : index
    %28 = vector.load %arg5[%c0_9, %c0_10] : memref<1x128xf32, #tpu.memory_space<vmem>>, vector<1x128xf32>
    %29 = vector.broadcast %28 : vector<1x128xf32> to vector<8x128xf32>
    %30 = arith.addf %27, %29 : vector<8x128xf32>
    %cst_11 = arith.constant 0.000000e+00 : f32
    %31 = vector.broadcast %cst_11 : f32 to vector<8x128xf32>
    %32 = arith.maximumf %30, %31 : vector<8x128xf32>
    %c0_12 = arith.constant 0 : index
    %c0_13 = arith.constant 0 : index
    %33 = vector.load %arg6[%c0_12, %c0_13] : memref<128x128xf32, #tpu.memory_space<vmem>>, vector<128x128xf32>
    %cst_14 = arith.constant dense<0.000000e+00> : vector<8x128xf32>
    %34 = tpu.matmul %32, %33, %cst_14 {dimension_numbers = #tpu.dot_dimension_numbers<[1], [0], [0], [1], [0, 0, 1, 1], [], []>} : vector<8x128xf32>, vector<128x128xf32>, vector<8x128xf32> -> vector<8x128xf32>
    %c0_15 = arith.constant 0 : index
    %c0_16 = arith.constant 0 : index
    %35 = vector.load %arg7[%c0_15, %c0_16] : memref<1x128xf32, #tpu.memory_space<vmem>>, vector<1x128xf32>
    %36 = vector.broadcast %35 : vector<1x128xf32> to vector<8x128xf32>
    %37 = arith.addf %34, %36 : vector<8x128xf32>
    %cst_17 = arith.constant 0.000000e+00 : f32
    %38 = vector.broadcast %cst_17 : f32 to vector<8x128xf32>
    %39 = arith.maximumf %37, %38 : vector<8x128xf32>
    %c0_18 = arith.constant 0 : index
    %c0_19 = arith.constant 0 : index
    %40 = vector.load %arg8[%c0_18, %c0_19] : memref<128x128xf32, #tpu.memory_space<vmem>>, vector<128x128xf32>
    %cst_20 = arith.constant dense<0.000000e+00> : vector<8x128xf32>
    %41 = tpu.matmul %39, %40, %cst_20 {dimension_numbers = #tpu.dot_dimension_numbers<[1], [0], [0], [1], [0, 0, 1, 1], [], []>} : vector<8x128xf32>, vector<128x128xf32>, vector<8x128xf32> -> vector<8x128xf32>
    %42 = vector.extract_strided_slice %41 {offsets = [0, 0], sizes = [8, 2], strides = [1, 1]} : vector<8x128xf32> to vector<8x2xf32>
    %c0_21 = arith.constant 0 : index
    %c0_22 = arith.constant 0 : index
    %43 = vector.load %arg9[%c0_21, %c0_22] : memref<1x2xf32, #tpu.memory_space<vmem>>, vector<1x2xf32>
    %44 = vector.broadcast %43 : vector<1x2xf32> to vector<8x2xf32>
    %45 = arith.addf %42, %44 : vector<8x2xf32>
    %c0_23 = arith.constant 0 : index
    %c0_24 = arith.constant 0 : index
    %46 = vector.load %arg10[%c0_23, %c0_24] : memref<8x2xf32, #tpu.memory_space<vmem>>, vector<8x2xf32>
    tpu.vector_store %arg10[%c0_23, %c0_24], %45 {strides = array<i32>} : memref<8x2xf32, #tpu.memory_space<vmem>>, vector<8x2xf32>,
    return
  }
  func.func @transform_0(%arg0: i32) -> (i32, i32) {
    %c0_i32 = arith.constant 0 : i32
    %c0_i32_0 = arith.constant 0 : i32
    return %arg0, %c0_i32 : i32, i32
  }
  func.func @transform_1(%arg0: i32) -> (i32, i32) {
    %c0_i32 = arith.constant 0 : i32
    %c0_i32_0 = arith.constant 0 : i32
    %c0_i32_1 = arith.constant 0 : i32
    return %c0_i32, %c0_i32_0 : i32, i32
  }
  func.func @transform_2(%arg0: i32) -> (i32, i32) {
    %c0_i32 = arith.constant 0 : i32
    %c0_i32_0 = arith.constant 0 : i32
    %c0_i32_1 = arith.constant 0 : i32
    return %c0_i32, %c0_i32_0 : i32, i32
  }
  func.func @transform_3(%arg0: i32) -> (i32, i32) {
    %c0_i32 = arith.constant 0 : i32
    %c0_i32_0 = arith.constant 0 : i32
    %c0_i32_1 = arith.constant 0 : i32
    return %c0_i32, %c0_i32_0 : i32, i32
  }
  func.func @transform_4(%arg0: i32) -> (i32, i32) {
    %c0_i32 = arith.constant 0 : i32
    %c0_i32_0 = arith.constant 0 : i32
    %c0_i32_1 = arith.constant 0 : i32
    return %c0_i32, %c0_i32_0 : i32, i32
  }
  func.func @transform_5(%arg0: i32) -> (i32, i32) {
    %c0_i32 = arith.constant 0 : i32
    %c0_i32_0 = arith.constant 0 : i32
    %c0_i32_1 = arith.constant 0 : i32
    return %c0_i32, %c0_i32_0 : i32, i32
  }
  func.func @transform_6(%arg0: i32) -> (i32, i32) {
    %c0_i32 = arith.constant 0 : i32
    %c0_i32_0 = arith.constant 0 : i32
    %c0_i32_1 = arith.constant 0 : i32
    return %c0_i32, %c0_i32_0 : i32, i32
  }
  func.func @transform_7(%arg0: i32) -> (i32, i32) {
    %c0_i32 = arith.constant 0 : i32
    %c0_i32_0 = arith.constant 0 : i32
    %c0_i32_1 = arith.constant 0 : i32
    return %c0_i32, %c0_i32_0 : i32, i32
  }
  func.func @transform_8(%arg0: i32) -> (i32, i32) {
    %c0_i32 = arith.constant 0 : i32
    %c0_i32_0 = arith.constant 0 : i32
    %c0_i32_1 = arith.constant 0 : i32
    return %c0_i32, %c0_i32_0 : i32, i32
  }
  func.func @transform_9(%arg0: i32) -> (i32, i32) {
    %c0_i32 = arith.constant 0 : i32
    %c0_i32_0 = arith.constant 0 : i32
    return %arg0, %c0_i32 : i32, i32
  }
}

</mosaic_0001>

<llo_original>
// kernel: fcnn_forward.1
$region0: #{fcnn_forward.1}
  #allocation0 [shape = 'u32[]', space=smem, size = 0x4, offset = 0x4, fixed_abs, tag = 'smem constant byte address 0x4 - core index']
  #allocation1 [shape = 'u32[72,128]{1,0:T(1,128)}', space=vmem, size = 0x9000, scoped, tag = 'internal scratch']
  %s0 = inlined_call_operand.vmem [shape: f32[8,3], index: 0, kind: input, shape index: {}]
  %s1 = inlined_call_operand.vmem [shape: f32[3,128], index: 1, kind: input, shape index: {}]
  %s2 = inlined_call_operand.vmem [shape: f32[1,128], index: 2, kind: input, shape index: {}]
  %s3 = inlined_call_operand.hbm [shape: f32[128,128], index: 3, kind: input, shape index: {}]
  %s4 = inlined_call_operand.vmem [shape: f32[1,128], index: 4, kind: input, shape index: {}]
  %s5 = inlined_call_operand.hbm [shape: f32[128,128], index: 5, kind: input, shape index: {}]
  %s6 = inlined_call_operand.vmem [shape: f32[1,128], index: 6, kind: input, shape index: {}]
  %s7 = inlined_call_operand.hbm [shape: f32[128,128], index: 7, kind: input, shape index: {}]
  %s8 = inlined_call_operand.vmem [shape: f32[1,2], index: 8, kind: input, shape index: {}]
  %s9 = inlined_call_operand.vmem [shape: f32[8,2], index: 9, kind: output, shape index: {}]
  %s10 = sld [smem:[#allocation0]]
  $region58: #{fcnn_forward.1} parent=0
    _
  %s12 = ssub.s32 1, %s10
  %s13 = scalar_select 0, %s12, %s10
  $region1: #{fcnn_forward.1} parent=0
    #allocation2 [shape = 'u8[65536]{0}', space=vmem, size = 0x10000, scoped, tag = 'input window, operand 3, single buffered']
    #allocation3 [shape = 's32[1]{0}', space=sflag, size = 0x4, scoped, tag = 'scoped memory for fcnn_forward.1']
    #allocation4 [shape = 'u8[65536]{0}', space=vmem, size = 0x10000, scoped, tag = 'input window, operand 5, single buffered']
    #allocation5 [shape = 's32[1]{0}', space=sflag, size = 0x4, scoped, tag = 'scoped memory for fcnn_forward.1']
    #allocation6 [shape = 'u8[65536]{0}', space=vmem, size = 0x10000, scoped, tag = 'input window, operand 7, single buffered']
    %14 = vsyncpa [#allocation3], 0
    %15 = vsyncpa [#allocation5], 0
    // Predicated region
    $region2: #{fcnn_forward.1} parent=1 // pred_check
      _
    $region3: #{fcnn_forward.1} parent=1 // pred_check_branch
      %17 = sbr.rel (0) target = $region5
    $region4: #{fcnn_forward.1} parent=1 // pred_region
      _
    $region5: #{fcnn_forward.1} parent=1 // pred_fallthru
      _
    // Predicated region
    $region6: #{fcnn_forward.1} parent=1 // pred_check
      _
    $region7: #{fcnn_forward.1} parent=1 // pred_check_branch
      %19 = sbr.rel (0) target = $region9
    $region8: #{fcnn_forward.1} parent=1 // pred_region
      _
    $region9: #{fcnn_forward.1} parent=1 // pred_fallthru
      _
    // Predicated region
    $region10: #{fcnn_forward.1} parent=1 // pred_check
      _
    $region11: #{fcnn_forward.1} parent=1 // pred_check_branch
      %21 = sbr.rel (0) target = $region13
    $region12: #{fcnn_forward.1} parent=1 // pred_region
      _
    $region13: #{fcnn_forward.1} parent=1 // pred_fallthru
      _
    // Predicated region
    $region14: #{fcnn_forward.1} parent=1 // pred_check
      _
    $region15: #{fcnn_forward.1} parent=1 // pred_check_branch
      %23 = sbr.rel (0) target = $region17
    $region16: #{fcnn_forward.1} parent=1 // pred_region
      %25 = vsyncadd [#allocation3], 0
      %s26 = sshll.u32 %s3, 4
      %s27 = int_to_ptr.hbm [resolvable:$true] %s26
      %s28 = sshll.u32 [#allocation2], 4
      %s29 = int_to_ptr.vmem [resolvable:$true] %s28
      %34 = dma.hbm_to_vmem [thread:$0]  %s27, 2048, %s29, [#allocation3], 128, 128, 8
    $region17: #{fcnn_forward.1} parent=1 // pred_fallthru
      _
    // Predicated region
    $region18: #{fcnn_forward.1} parent=1 // pred_check
      _
    $region19: #{fcnn_forward.1} parent=1 // pred_check_branch
      %36 = sbr.rel (0) target = $region21
    $region20: #{fcnn_forward.1} parent=1 // pred_region
      _
    $region21: #{fcnn_forward.1} parent=1 // pred_fallthru
      _
    // Predicated region
    $region22: #{fcnn_forward.1} parent=1 // pred_check
      _
    $region23: #{fcnn_forward.1} parent=1 // pred_check_branch
      %38 = sbr.rel (0) target = $region25
    $region24: #{fcnn_forward.1} parent=1 // pred_region
      %40 = vsyncadd [#allocation5], 0
      %s41 = sshll.u32 %s5, 4
      %s42 = int_to_ptr.hbm [resolvable:$true] %s41
      %s43 = sshll.u32 [#allocation4], 4
      %s44 = int_to_ptr.vmem [resolvable:$true] %s43
      %49 = dma.hbm_to_vmem [thread:$0]  %s42, 2048, %s44, [#allocation5], 128, 128, 8
    $region25: #{fcnn_forward.1} parent=1 // pred_fallthru
      _
    // Predicated region
    $region26: #{fcnn_forward.1} parent=1 // pred_check
      _
    $region27: #{fcnn_forward.1} parent=1 // pred_check_branch
      %51 = sbr.rel (0) target = $region29
    $region28: #{fcnn_forward.1} parent=1 // pred_region
      _
    $region29: #{fcnn_forward.1} parent=1 // pred_fallthru
      _
    // Predicated region
    $region30: #{fcnn_forward.1} parent=1 // pred_check
      _
    $region31: #{fcnn_forward.1} parent=1 // pred_check_branch
      %53 = sbr.rel (0) target = $region33
    $region32: #{fcnn_forward.1} parent=1 // pred_region
      %55 = vsyncadd [#allocation5], 0
      %s56 = sshll.u32 %s7, 4
      %s57 = int_to_ptr.hbm [resolvable:$true] %s56
      %s58 = sshll.u32 [#allocation6], 4
      %s59 = int_to_ptr.vmem [resolvable:$true] %s58
      %64 = dma.hbm_to_vmem [thread:$0]  %s57, 2048, %s59, [#allocation5], 128, 128, 8
    $region33: #{fcnn_forward.1} parent=1 // pred_fallthru
      _
    // Predicated region
    $region34: #{fcnn_forward.1} parent=1 // pred_check
      _
    $region35: #{fcnn_forward.1} parent=1 // pred_check_branch
      %66 = sbr.rel (0) target = $region37
    $region36: #{fcnn_forward.1} parent=1 // pred_region
      _
    $region37: #{fcnn_forward.1} parent=1 // pred_fallthru
      _
    // Predicated region
    $region38: #{fcnn_forward.1} parent=1 // pred_check
      _
    $region39: #{fcnn_forward.1} parent=1 // pred_check_branch
      %68 = sbr.rel (0) target = $region41
    $region40: #{fcnn_forward.1} parent=1 // pred_region
      %70 = dma.done [#allocation3], 2048
    $region41: #{fcnn_forward.1} parent=1 // pred_fallthru
      _
    // Predicated region
    $region42: #{fcnn_forward.1} parent=1 // pred_check
      _
    $region43: #{fcnn_forward.1} parent=1 // pred_check_branch
      %72 = sbr.rel (0) target = $region45
    $region44: #{fcnn_forward.1} parent=1 // pred_region
      %74 = dma.done [#allocation5], 2048
    $region45: #{fcnn_forward.1} parent=1 // pred_fallthru
      _
    // Predicated region
    $region46: #{fcnn_forward.1} parent=1 // pred_check
      _
    $region47: #{fcnn_forward.1} parent=1 // pred_check_branch
      %76 = sbr.rel (0) target = $region49
    $region48: #{fcnn_forward.1} parent=1 // pred_region
      %78 = dma.done [#allocation5], 2048
    $region49: #{fcnn_forward.1} parent=1 // pred_fallthru
      _
    %v79 = vld [vmem:[%s0] sm:$0xff]
    %v80 = vld [vmem:[%s1] sm:$0x7]
    %82 = vset.pattern.permute.xlu0 0
    %83 = vperm.xlu0 %82, %v79
    %v84 = vpop.permute.xlu0 %83
    %v86 = vperm.slane %v80, 0
    %v87 = vmul.f32 %v84, %v86
    %v88 = vadd.f32 %v87, 0.0
    %89 = vset.pattern.permute.xlu0 1
    %90 = vperm.xlu0 %89, %v79
    %v91 = vpop.permute.xlu0 %90
    %v93 = vperm.slane %v80, 1
    %v94 = vmul.f32 %v91, %v93
    %v95 = vadd.f32 %v88, %v94
    %96 = vset.pattern.permute.xlu0 2
    %97 = vperm.xlu0 %96, %v79
    %v98 = vpop.permute.xlu0 %97
    %v100 = vperm.slane %v80, 2
    %v101 = vmul.f32 %v98, %v100
    %v102 = vadd.f32 %v95, %v101
    %v103 = vld [vmem:[%s2] sm:$0x1]
    %v105 = vperm.slane %v103, 0
    %v107 = vadd.f32 %v102, %v105
    %v108 = vmax.f32 %v107, 0.0
    %v109 = vld [vmem:[#allocation2] sm:$0xff]
    %v110 = vld [vmem:[#allocation2 + $0x8] sm:$0xff]
    %v111 = vld [vmem:[#allocation2 + $0x10] sm:$0xff]
    %v112 = vld [vmem:[#allocation2 + $0x18] sm:$0xff]
    %v113 = vld [vmem:[#allocation2 + $0x20] sm:$0xff]
    %v114 = vld [vmem:[#allocation2 + $0x28] sm:$0xff]
    %v115 = vld [vmem:[#allocation2 + $0x30] sm:$0xff]
    %v116 = vld [vmem:[#allocation2 + $0x38] sm:$0xff]
    %v117 = vld [vmem:[#allocation2 + $0x40] sm:$0xff]
    %v118 = vld [vmem:[#allocation2 + $0x48] sm:$0xff]
    %v119 = vld [vmem:[#allocation2 + $0x50] sm:$0xff]
    %v120 = vld [vmem:[#allocation2 + $0x58] sm:$0xff]
    %v121 = vld [vmem:[#allocation2 + $0x60] sm:$0xff]
    %v122 = vld [vmem:[#allocation2 + $0x68] sm:$0xff]
    %v123 = vld [vmem:[#allocation2 + $0x70] sm:$0xff]
    %v124 = vld [vmem:[#allocation2 + $0x78] sm:$0xff]
    %v125 = vld [vmem:[%s4] sm:$0x1]
    %v127 = vperm.slane %v125, 0
    %129 = vmatpush.msra.mxu0 %v124
    %130 = vmatpush.msra.mxu0 %v123
    %131 = vmatpush.msra.mxu0 %v122
    %132 = vmatpush.msra.mxu0 %v121
    %133 = vmatpush.msra.mxu0 %v120
    %134 = vmatpush.msra.mxu0 %v119
    %135 = vmatpush.msra.mxu0 %v118
    %136 = vmatpush.msra.mxu0 %v117
    %137 = vmatpush.msra.mxu0 %v116
    %138 = vmatpush.msra.mxu0 %v115
    %139 = vmatpush.msra.mxu0 %v114
    %140 = vmatpush.msra.mxu0 %v113
    %141 = vmatpush.msra.mxu0 %v112
    %142 = vmatpush.msra.mxu0 %v111
    %143 = vmatpush.msra.mxu0 %v110
    %144 = vmatpush.msra.mxu0 %v109
    %145 = vmatmul.f32.gmra.mxu0 %v108
    %v146 = vpop.f32.mrf.mxu0
    %v147 = vadd.f32 %v127, %v146
    %148 = vdwg.mxu0
    %v149 = vmax.f32 %v147, 0.0
    %v150 = vld [vmem:[#allocation4] sm:$0xff]
    %v151 = vld [vmem:[#allocation4 + $0x8] sm:$0xff]
    %v152 = vld [vmem:[#allocation4 + $0x10] sm:$0xff]
    %v153 = vld [vmem:[#allocation4 + $0x18] sm:$0xff]
    %v154 = vld [vmem:[#allocation4 + $0x20] sm:$0xff]
    %v155 = vld [vmem:[#allocation4 + $0x28] sm:$0xff]
    %v156 = vld [vmem:[#allocation4 + $0x30] sm:$0xff]
    %v157 = vld [vmem:[#allocation4 + $0x38] sm:$0xff]
    %v158 = vld [vmem:[#allocation4 + $0x40] sm:$0xff]
    %v159 = vld [vmem:[#allocation4 + $0x48] sm:$0xff]
    %v160 = vld [vmem:[#allocation4 + $0x50] sm:$0xff]
    %v161 = vld [vmem:[#allocation4 + $0x58] sm:$0xff]
    %v162 = vld [vmem:[#allocation4 + $0x60] sm:$0xff]
    %v163 = vld [vmem:[#allocation4 + $0x68] sm:$0xff]
    %v164 = vld [vmem:[#allocation4 + $0x70] sm:$0xff]
    %v165 = vld [vmem:[#allocation4 + $0x78] sm:$0xff]
    %v166 = vld [vmem:[%s6] sm:$0x1]
    %v168 = vperm.slane %v166, 0
    %170 = vmatpush.msra.mxu0 %v165
    %171 = vmatpush.msra.mxu0 %v164
    %172 = vmatpush.msra.mxu0 %v163
    %173 = vmatpush.msra.mxu0 %v162
    %174 = vmatpush.msra.mxu0 %v161
    %175 = vmatpush.msra.mxu0 %v160
    %176 = vmatpush.msra.mxu0 %v159
    %177 = vmatpush.msra.mxu0 %v158
    %178 = vmatpush.msra.mxu0 %v157
    %179 = vmatpush.msra.mxu0 %v156
    %180 = vmatpush.msra.mxu0 %v155
    %181 = vmatpush.msra.mxu0 %v154
    %182 = vmatpush.msra.mxu0 %v153
    %183 = vmatpush.msra.mxu0 %v152
    %184 = vmatpush.msra.mxu0 %v151
    %185 = vmatpush.msra.mxu0 %v150
    %186 = vmatmul.f32.gmra.mxu0 %v149
    %v187 = vpop.f32.mrf.mxu0
    %v188 = vadd.f32 %v168, %v187
    %189 = vdwg.mxu0
    %v190 = vmax.f32 %v188, 0.0
    %v191 = vld [vmem:[#allocation6] sm:$0xff]
    %v192 = vld [vmem:[#allocation6 + $0x8] sm:$0xff]
    %v193 = vld [vmem:[#allocation6 + $0x10] sm:$0xff]
    %v194 = vld [vmem:[#allocation6 + $0x18] sm:$0xff]
    %v195 = vld [vmem:[#allocation6 + $0x20] sm:$0xff]
    %v196 = vld [vmem:[#allocation6 + $0x28] sm:$0xff]
    %v197 = vld [vmem:[#allocation6 + $0x30] sm:$0xff]
    %v198 = vld [vmem:[#allocation6 + $0x38] sm:$0xff]
    %v199 = vld [vmem:[#allocation6 + $0x40] sm:$0xff]
    %v200 = vld [vmem:[#allocation6 + $0x48] sm:$0xff]
    %v201 = vld [vmem:[#allocation6 + $0x50] sm:$0xff]
    %v202 = vld [vmem:[#allocation6 + $0x58] sm:$0xff]
    %v203 = vld [vmem:[#allocation6 + $0x60] sm:$0xff]
    %v204 = vld [vmem:[#allocation6 + $0x68] sm:$0xff]
    %v205 = vld [vmem:[#allocation6 + $0x70] sm:$0xff]
    %v206 = vld [vmem:[#allocation6 + $0x78] sm:$0xff]
    %207 = vmatpush.msra.mxu0 %v206
    %208 = vmatpush.msra.mxu0 %v205
    %209 = vmatpush.msra.mxu0 %v204
    %210 = vmatpush.msra.mxu0 %v203
    %211 = vmatpush.msra.mxu0 %v202
    %212 = vmatpush.msra.mxu0 %v201
    %213 = vmatpush.msra.mxu0 %v200
    %214 = vmatpush.msra.mxu0 %v199
    %215 = vmatpush.msra.mxu0 %v198
    %216 = vmatpush.msra.mxu0 %v197
    %217 = vmatpush.msra.mxu0 %v196
    %218 = vmatpush.msra.mxu0 %v195
    %219 = vmatpush.msra.mxu0 %v194
    %220 = vmatpush.msra.mxu0 %v193
    %221 = vmatpush.msra.mxu0 %v192
    %222 = vmatpush.msra.mxu0 %v191
    %223 = vmatmul.f32.gmra.mxu0 %v190
    %v224 = vpop.f32.mrf.mxu0
    %v225 = vadd.f32 0.0, %v224
    %226 = vdwg.mxu0
    %v227 = vld [vmem:[%s8] sm:$0x1]
    %v229 = vperm.slane %v227, 0
    %v231 = vadd.f32 %v225, %v229
    %vm232 = vcmask 15360
    %233 = vst.msk [vmem:[%s9] sm:$0xff] %vm232, %v231
    // Predicated region
    $region50: #{fcnn_forward.1} parent=1 // pred_check
      _
    $region51: #{fcnn_forward.1} parent=1 // pred_check_branch
      %235 = sbr.rel (0) target = $region53
    $region52: #{fcnn_forward.1} parent=1 // pred_region
      _
    $region53: #{fcnn_forward.1} parent=1 // pred_fallthru
      _
    // Predicated region
    $region54: #{fcnn_forward.1} parent=1 // pred_check
      _
    $region55: #{fcnn_forward.1} parent=1 // pred_check_branch
      %237 = sbr.rel (0) target = $region57
    $region56: #{fcnn_forward.1} parent=1 // pred_region
      _
    $region57: #{fcnn_forward.1} parent=1 // pred_fallthru
      _
    %238 = vsyncpa [#allocation3], 1
    %239 = vsyncpa [#allocation5], 1

</llo_original>
